<compile_context>
chip_gen: v7x
topology: tpu7x:2x2x1
jax: 0.10.0
libtpu: 0.0.40
codegen_flags: <defaults>
</compile_context>

<pallas_src>
import functools

import jax
import jax.numpy as jnp
from jax import lax
from jax.experimental import pallas as pl
from jax.experimental.pallas import tpu as pltpu

_IGNORE_INDEX = -100


def _round_up(x, m):
    return (x + m - 1) // m * m


# ----------------------------- Pallas kernel -------------------------------


def _fused_linear_ce_kernel(x_ref, w_ref, b_ref, gold_ref,
                            logits_ref, loss_ref, *, nlabels):
    # x: (TB, D)  w: (D, Lp)  b: (1, Lp)  gold: (TB, 1) int32
    # logits out: (TB, Lp) f32 ; loss out: (8, Lp) f32 per-tile partial sums.
    logits = jnp.dot(x_ref[...], w_ref[...],
                     preferred_element_type=jnp.float32) + b_ref[...]
    logits_ref[...] = logits

    tb, lp = logits.shape
    lane_ids = lax.broadcasted_iota(jnp.int32, (tb, lp), 1)

    # LSE over the real nlabels lanes only (padded lanes masked to a large
    # negative so exp() underflows to zero).
    masked = jnp.where(lane_ids < nlabels, logits, jnp.float32(-1e30))
    m = jnp.max(masked, axis=-1, keepdims=True)
    lse = m + jnp.log(jnp.sum(jnp.exp(masked - m), axis=-1, keepdims=True))

    gold = gold_ref[...]                                      # (TB, 1)
    row_valid = (gold != _IGNORE_INDEX).astype(jnp.float32)   # ignore_index mask
    onehot = (lane_ids == gold).astype(jnp.float32)           # (TB, Lp)
    contrib = onehot * (lse - logits) * row_valid             # per-(row,lane) NLL
    part = jnp.sum(contrib, axis=0, keepdims=True)            # (1, Lp) per-lane partials

    # Lane-dense (8, Lp) partial-loss block: partials live on sublane 0, zeros elsewhere.
    sub_ids = lax.broadcasted_iota(jnp.int32, (8, lp), 0)
    loss_ref[...] = jnp.where(sub_ids == 0, part, jnp.float32(0.0))


# ------------------------------ JAX wrapper --------------------------------


def _choose_tile_b(batch, d, l_pad, dtype_bytes=4, vmem_budget=24 << 20):
    """Largest TB (<=512, multiple of 8) whose double-buffered x/logits/gold tiles
    plus the resident (D, L_pad) weight fit comfortably under the scoped-VMEM
    default -- budgeted for v7x's 64 MiB physical VMEM so it also runs on v5e/v6e."""
    tb = 512
    resident = (d + 1) * l_pad * dtype_bytes
    while tb > 8 and 2 * 2 * tb * (d + l_pad + 1) * dtype_bytes + resident > vmem_budget:
        tb //= 2
    return min(tb, _round_up(batch, 8))


def init_params(key, input_dim, nlabels, dtype=jnp.float32):
    """Deterministic init mimicking torch.nn.Linear default (uniform +-1/sqrt(fan_in)).
    Weight stored pre-transposed as (input_dim, nlabels) for a plain MXU matmul."""
    kw, kb = jax.random.split(key)
    bound = 1.0 / jnp.sqrt(jnp.asarray(input_dim, dtype))
    weight = jax.random.uniform(kw, (input_dim, nlabels), dtype, -bound, bound)
    bias = jax.random.uniform(kb, (nlabels,), dtype, -bound, bound)
    return weight, bias


@jax.jit
def _forward_impl(mlm_out, weight, bias, gold, loss_weight):
    batch, d = mlm_out.shape
    nlabels = weight.shape[1]
    l_pad = _round_up(max(nlabels, 128), 128)
    tb = _choose_tile_b(batch, d, l_pad)
    b_pad = _round_up(batch, tb)
    num_tiles = b_pad // tb

    # Padding: extra rows are zeros with gold=-100 (zero loss contribution),
    # extra label columns are zero weight/bias (masked inside the kernel's LSE
    # and sliced off below).
    x = jnp.zeros((b_pad, d), mlm_out.dtype).at[:batch].set(mlm_out)
    w = jnp.zeros((d, l_pad), weight.dtype).at[:, :nlabels].set(weight)
    b = jnp.zeros((1, l_pad), bias.dtype).at[0, :nlabels].set(bias)
    g = jnp.full((b_pad, 1), _IGNORE_INDEX, jnp.int32).at[:batch, 0].set(
        gold.astype(jnp.int32))

    kernel = functools.partial(_fused_linear_ce_kernel, nlabels=nlabels)
    cost = pl.CostEstimate(
        flops=2 * b_pad * d * l_pad,
        transcendentals=b_pad * l_pad,
        bytes_accessed=4 * (b_pad * d + d * l_pad + 2 * b_pad * l_pad))

    logits_pad, loss_parts = pl.pallas_call(
        kernel,
        out_shape=(jax.ShapeDtypeStruct((b_pad, l_pad), jnp.float32),
                   jax.ShapeDtypeStruct((num_tiles * 8, l_pad), jnp.float32)),
        grid=(num_tiles,),
        in_specs=[
            pl.BlockSpec((tb, d), lambda i: (i, 0)),       # activations, tiled
            pl.BlockSpec((d, l_pad), lambda i: (0, 0)),    # weight, resident
            pl.BlockSpec((1, l_pad), lambda i: (0, 0)),    # bias, resident
            pl.BlockSpec((tb, 1), lambda i: (i, 0)),       # gold labels, tiled
        ],
        out_specs=(
            pl.BlockSpec((tb, l_pad), lambda i: (i, 0)),   # lane-dense logits
            pl.BlockSpec((8, l_pad), lambda i: (i, 0)),    # per-tile loss partials
        ),
        compiler_params=pltpu.CompilerParams(
            dimension_semantics=("parallel",)),
        cost_estimate=cost,
    )(x, w, b, g)

    logits = logits_pad[:batch, :nlabels]
    loss = loss_weight * jnp.sum(loss_parts)
    return logits, loss


def machamp_classification_decoder_forward(mlm_out, weight, bias, mask=None,
                                           gold=None, loss_weight=1.0):
    """Mirror of MachampClassificationDecoder.forward (tensor outputs only)."""
    # TODO(synk): decoder_dropout with p > 0 would need pltpu.prng_* inside the
    #             kernel; default p=0.0 makes it an identity here.
    has_gold = gold is not None
    if not has_gold:
        gold = jnp.full((mlm_out.shape[0],), _IGNORE_INDEX, jnp.int32)
    logits, loss = _forward_impl(mlm_out, weight, bias, gold,
                                 jnp.float32(loss_weight))
    out = {"logits": logits}
    if has_gold:
        out["loss"] = loss
    return out


# --------------------------------- main -------------------------------------


def _reference(mlm_out, weight, bias, gold, loss_weight):
    logits = mlm_out.astype(jnp.float32) @ weight + bias
    lse = jax.scipy.special.logsumexp(logits, axis=-1)
    safe_gold = jnp.where(gold == _IGNORE_INDEX, 0, gold)
    gold_logit = jnp.take_along_axis(logits, safe_gold[:, None], axis=-1)[:, 0]
    per_row = jnp.where(gold == _IGNORE_INDEX, 0.0, lse - gold_logit)
    return logits, loss_weight * jnp.sum(per_row)


if __name__ == "__main__":
    key = jax.random.PRNGKey(0)
    k_x, k_p, k_g = jax.random.split(key, 3)

    batch, input_dim, nlabels = 8, 32, 16
    loss_weight = 1.0

    mlm_out = jax.random.normal(k_x, (batch, input_dim), jnp.float32)
    mask = jnp.ones((batch,), jnp.bool_)  # unused by forward, kept for signature parity
    weight, bias = init_params(k_p, input_dim, nlabels)
    gold = jax.random.randint(k_g, (batch,), 0, nlabels, jnp.int32)
    gold = gold.at[3].set(_IGNORE_INDEX)  # exercise ignore_index

    out = machamp_classification_decoder_forward(
        mlm_out, weight, bias, mask=mask, gold=gold, loss_weight=loss_weight)
    logits = jax.block_until_ready(out["logits"])
    loss = jax.block_until_ready(out["loss"])

    ref_logits, ref_loss = _reference(mlm_out, weight, bias, gold, loss_weight)
    assert jnp.allclose(logits, ref_logits, rtol=1e-5, atol=1e-5)
    assert jnp.allclose(loss, ref_loss, rtol=1e-5, atol=1e-5)

    # Also exercise the gold=None (inference-only) path.
    out_nog = machamp_classification_decoder_forward(mlm_out, weight, bias, mask=mask)
    jax.block_until_ready(out_nog["logits"])
    assert "loss" not in out_nog
    assert jnp.allclose(out_nog["logits"], ref_logits, rtol=1e-5, atol=1e-5)

    print("KERNEL_OK")
</pallas_src>

<mosaic_0001>
module attributes {stable_mosaic.version = 11 : i64} {
  func.func @_fused_linear_ce_kernel(%arg0: i32, %arg1: memref<8x32xf32, #tpu.memory_space<vmem>>, %arg2: memref<32x128xf32, #tpu.memory_space<vmem>>, %arg3: memref<1x128xf32, #tpu.memory_space<vmem>>, %arg4: memref<8x1xi32, #tpu.memory_space<vmem>>, %arg5: memref<8x128xf32, #tpu.memory_space<vmem>>, %arg6: memref<8x128xf32, #tpu.memory_space<vmem>>) attributes {dimension_semantics = [#tpu.dimension_semantics<parallel>], iteration_bounds = array<i64: 1>, scalar_prefetch = 0 : i64, scratch_operands = 0 : i64, tpu.core_type = #tpu.core_type<tc>, window_params = [{transform_indices = @transform_0, window_bounds = array<i64: 8, 32>}, {pipeline_mode = #tpu.pipeline_mode<synchronous>, transform_indices = @transform_1, window_bounds = array<i64: 32, 128>}, {pipeline_mode = #tpu.pipeline_mode<synchronous>, transform_indices = @transform_2, window_bounds = array<i64: 1, 128>}, {transform_indices = @transform_3, window_bounds = array<i64: 8, 1>}, {transform_indices = @transform_4, window_bounds = array<i64: 8, 128>}, {transform_indices = @transform_5, window_bounds = array<i64: 8, 128>}]} {
    %c0 = arith.constant 0 : index
    %c0_0 = arith.constant 0 : index
    %0 = vector.load %arg1[%c0, %c0_0] : memref<8x32xf32, #tpu.memory_space<vmem>>, vector<8x32xf32>
    %c0_1 = arith.constant 0 : index
    %c0_2 = arith.constant 0 : index
    %1 = vector.load %arg2[%c0_1, %c0_2] : memref<32x128xf32, #tpu.memory_space<vmem>>, vector<32x128xf32>
    %cst = arith.constant dense<0.000000e+00> : vector<8x128xf32>
    %2 = tpu.matmul %0, %1, %cst {dimension_numbers = #tpu.dot_dimension_numbers<[1], [0], [0], [1], [0, 0, 1, 1], [], []>} : vector<8x32xf32>, vector<32x128xf32>, vector<8x128xf32> -> vector<8x128xf32>
    %c0_3 = arith.constant 0 : index
    %c0_4 = arith.constant 0 : index
    %3 = vector.load %arg3[%c0_3, %c0_4] : memref<1x128xf32, #tpu.memory_space<vmem>>, vector<1x128xf32>
    %4 = vector.broadcast %3 : vector<1x128xf32> to vector<8x128xf32>
    %5 = arith.addf %2, %4 : vector<8x128xf32>
    %c0_5 = arith.constant 0 : index
    %c0_6 = arith.constant 0 : index
    %6 = vector.load %arg5[%c0_5, %c0_6] : memref<8x128xf32, #tpu.memory_space<vmem>>, vector<8x128xf32>
    tpu.vector_store %arg5[%c0_5, %c0_6], %5 {strides = array<i32>} : memref<8x128xf32, #tpu.memory_space<vmem>>, vector<8x128xf32>,
    %7 = tpu.iota {dimensions = array<i32: 1>} : vector<8x128xi32>
    %c16_i32 = arith.constant 16 : i32
    %8 = vector.broadcast %c16_i32 : i32 to vector<8x128xi32>
    %9 = arith.cmpi slt, %7, %8 : vector<8x128xi32>
    %cst_7 = arith.constant -1.000000e+30 : f32
    %10 = vector.broadcast %cst_7 : f32 to vector<8x128xf32>
    %11 = arith.select %9, %5, %10 : vector<8x128xi1>, vector<8x128xf32>
    %cst_8 = arith.constant dense<0xFF800000> : vector<8xf32>
    %12 = vector.multi_reduction <maximumf>, %11, %cst_8 [1] : vector<8x128xf32> to vector<8xf32>
    %13 = vector.shape_cast %12 : vector<8xf32> to vector<8x1xf32>
    %14 = vector.broadcast %13 : vector<8x1xf32> to vector<8x128xf32>
    %15 = arith.subf %11, %14 : vector<8x128xf32>
    %16 = math.exp %15 : vector<8x128xf32>
    %cst_9 = arith.constant dense<0.000000e+00> : vector<8xf32>
    %17 = vector.multi_reduction <add>, %16, %cst_9 [1] : vector<8x128xf32> to vector<8xf32>
    %18 = vector.shape_cast %17 : vector<8xf32> to vector<8x1xf32>
    %19 = math.log %18 : vector<8x1xf32>
    %20 = arith.addf %13, %19 : vector<8x1xf32>
    %c0_10 = arith.constant 0 : index
    %c0_11 = arith.constant 0 : index
    %21 = vector.load %arg4[%c0_10, %c0_11] : memref<8x1xi32, #tpu.memory_space<vmem>>, vector<8x1xi32>
    %c-100_i32 = arith.constant -100 : i32
    %22 = vector.broadcast %c-100_i32 : i32 to vector<8x1xi32>
    %23 = arith.cmpi ne, %21, %22 : vector<8x1xi32>
    %24 = arith.extui %23 : vector<8x1xi1> to vector<8x1xi32>
    %25 = arith.sitofp %24 : vector<8x1xi32> to vector<8x1xf32>
    %26 = vector.broadcast %21 : vector<8x1xi32> to vector<8x128xi32>
    %27 = arith.cmpi eq, %7, %26 : vector<8x128xi32>
    %28 = arith.extui %27 : vector<8x128xi1> to vector<8x128xi32>
    %29 = arith.sitofp %28 : vector<8x128xi32> to vector<8x128xf32>
    %30 = vector.broadcast %20 : vector<8x1xf32> to vector<8x128xf32>
    %31 = arith.subf %30, %5 : vector<8x128xf32>
    %32 = arith.mulf %29, %31 : vector<8x128xf32>
    %33 = vector.broadcast %25 : vector<8x1xf32> to vector<8x128xf32>
    %34 = arith.mulf %32, %33 : vector<8x128xf32>
    %cst_12 = arith.constant dense<0.000000e+00> : vector<128xf32>
    %35 = vector.multi_reduction <add>, %34, %cst_12 [0] : vector<8x128xf32> to vector<128xf32>
    %36 = vector.shape_cast %35 : vector<128xf32> to vector<1x128xf32>
    %37 = tpu.iota {dimensions = array<i32: 0>} : vector<8x128xi32>
    %c0_i32 = arith.constant 0 : i32
    %38 = vector.broadcast %c0_i32 : i32 to vector<8x128xi32>
    %39 = arith.cmpi eq, %37, %38 : vector<8x128xi32>
    %cst_13 = arith.constant 0.000000e+00 : f32
    %40 = vector.shape_cast %36 : vector<1x128xf32> to vector<1x128xf32>
    %41 = vector.broadcast %40 : vector<1x128xf32> to vector<8x128xf32>
    %42 = vector.broadcast %cst_13 : f32 to vector<8x128xf32>
    %43 = arith.select %39, %41, %42 : vector<8x128xi1>, vector<8x128xf32>
    %c0_14 = arith.constant 0 : index
    %c0_15 = arith.constant 0 : index
    %44 = vector.load %arg6[%c0_14, %c0_15] : memref<8x128xf32, #tpu.memory_space<vmem>>, vector<8x128xf32>
    tpu.vector_store %arg6[%c0_14, %c0_15], %43 {strides = array<i32>} : memref<8x128xf32, #tpu.memory_space<vmem>>, vector<8x128xf32>,
    return
  }
  func.func @transform_0(%arg0: i32) -> (i32, i32) {
    %c0_i32 = arith.constant 0 : i32
    %c0_i32_0 = arith.constant 0 : i32
    return %arg0, %c0_i32 : i32, i32
  }
  func.func @transform_1(%arg0: i32) -> (i32, i32) {
    %c0_i32 = arith.constant 0 : i32
    %c0_i32_0 = arith.constant 0 : i32
    %c0_i32_1 = arith.constant 0 : i32
    return %c0_i32, %c0_i32_0 : i32, i32
  }
  func.func @transform_2(%arg0: i32) -> (i32, i32) {
    %c0_i32 = arith.constant 0 : i32
    %c0_i32_0 = arith.constant 0 : i32
    %c0_i32_1 = arith.constant 0 : i32
    return %c0_i32, %c0_i32_0 : i32, i32
  }
  func.func @transform_3(%arg0: i32) -> (i32, i32) {
    %c0_i32 = arith.constant 0 : i32
    %c0_i32_0 = arith.constant 0 : i32
    return %arg0, %c0_i32 : i32, i32
  }
  func.func @transform_4(%arg0: i32) -> (i32, i32) {
    %c0_i32 = arith.constant 0 : i32
    %c0_i32_0 = arith.constant 0 : i32
    return %arg0, %c0_i32 : i32, i32
  }
  func.func @transform_5(%arg0: i32) -> (i32, i32) {
    %c0_i32 = arith.constant 0 : i32
    %c0_i32_0 = arith.constant 0 : i32
    return %arg0, %c0_i32 : i32, i32
  }
}

</mosaic_0001>

<llo_original>
// kernel: _forward_impl.1
$region0: #{_forward_impl.1}
  #allocation0 [shape = 'u32[]', space=smem, size = 0x4, offset = 0x4, fixed_abs, tag = 'smem constant byte address 0x4 - core index']
  #allocation1 [shape = 'u32[144,128]{1,0:T(1,128)}', space=vmem, size = 0x12000, scoped, tag = 'internal scratch']
  %s0 = inlined_call_operand.vmem [shape: f32[8,32], index: 0, kind: input, shape index: {}]
  %s1 = inlined_call_operand.vmem [shape: f32[32,128], index: 1, kind: input, shape index: {}]
  %s2 = inlined_call_operand.vmem [shape: f32[1,128], index: 2, kind: input, shape index: {}]
  %s3 = inlined_call_operand.vmem [shape: s32[8,1], index: 3, kind: input, shape index: {}]
  %s4 = inlined_call_operand.hbm [shape: f32[8,128], index: 4, kind: output, shape index: {0}]
  %s5 = inlined_call_operand.vmem [shape: f32[8,128], index: 5, kind: output, shape index: {1}]
  %6 = xla_tuple %s4, %s5
  %s7 = sld [smem:[#allocation0]]
  $region34: #{_forward_impl.1} parent=0
    _
  %s9 = ssub.s32 1, %s7
  %s10 = scalar_select 0, %s9, %s7
  $region1: #{_forward_impl.1} parent=0
    #allocation2 [shape = 'u8[4096]{0}', space=vmem, size = 0x1000, scoped, tag = 'output window, operand 0, single buffered']
    #allocation3 [shape = 's32[1]{0}', space=sflag, size = 0x4, scoped, tag = 'scoped memory for _forward_impl.1']
    %11 = vsyncpa [#allocation3], 0
    // Predicated region
    $region2: #{_forward_impl.1} parent=1 // pred_check
      _
    $region3: #{_forward_impl.1} parent=1 // pred_check_branch
      %13 = sbr.rel (0) target = $region5
    $region4: #{_forward_impl.1} parent=1 // pred_region
      _
    $region5: #{_forward_impl.1} parent=1 // pred_fallthru
      _
    // Predicated region
    $region6: #{_forward_impl.1} parent=1 // pred_check
      _
    $region7: #{_forward_impl.1} parent=1 // pred_check_branch
      %15 = sbr.rel (0) target = $region9
    $region8: #{_forward_impl.1} parent=1 // pred_region
      _
    $region9: #{_forward_impl.1} parent=1 // pred_fallthru
      _
    // Predicated region
    $region10: #{_forward_impl.1} parent=1 // pred_check
      _
    $region11: #{_forward_impl.1} parent=1 // pred_check_branch
      %17 = sbr.rel (0) target = $region13
    $region12: #{_forward_impl.1} parent=1 // pred_region
      _
    $region13: #{_forward_impl.1} parent=1 // pred_fallthru
      _
    // Predicated region
    $region14: #{_forward_impl.1} parent=1 // pred_check
      _
    $region15: #{_forward_impl.1} parent=1 // pred_check_branch
      %19 = sbr.rel (0) target = $region17
    $region16: #{_forward_impl.1} parent=1 // pred_region
      _
    $region17: #{_forward_impl.1} parent=1 // pred_fallthru
      _
    %v20 = vld [vmem:[%s0] sm:$0xff]
    %v21 = vld [vmem:[%s1] sm:$0xff]
    %v22 = vld [vmem:[%s1 + $0x8] sm:$0xff]
    %v23 = vld [vmem:[%s1 + $0x10] sm:$0xff]
    %v24 = vld [vmem:[%s1 + $0x18] sm:$0xff]
    %v25 = vld [vmem:[%s2] sm:$0x1]
    %v27 = vlaneseq
    %v28 = vshrl.u32 %v27, 7
    %v29 = vsub.s32 0, %v28
    %v30 = vrot.slane %v25, %v29
    %vm32 = vcmask 261120
    %v34 = vsel %vm32, %v20, 0
    %36 = vmatprep.subr.mxu0 0.0
    %37 = vmatpush1.msra.mxu0 %v21
    %38 = vmatprep.subr.mxu0 0.0
    %39 = vmatpush1.msra.mxu0 %v22
    %40 = vmatprep.subr.mxu0 0.0
    %41 = vmatpush1.msra.mxu0 %v23
    %42 = vmatprep.subr.mxu0 0.0
    %43 = vmatpush1.msra.mxu0 %v24
    %44 = vmatprep.subr.mxu0 0.0
    %45 = vmatpush1.msra.mxu0 0.0
    %46 = vmatprep.subr.mxu0 0.0
    %47 = vmatpush1.msra.mxu0 0.0
    %48 = vmatprep.subr.mxu0 0.0
    %49 = vmatpush1.msra.mxu0 0.0
    %50 = vmatprep.subr.mxu0 0.0
    %51 = vmatpush1.msra.mxu0 0.0
    %52 = vmatprep.subr.mxu0 0.0
    %53 = vmatpush1.msra.mxu0 0.0
    %54 = vmatprep.subr.mxu0 0.0
    %55 = vmatpush1.msra.mxu0 0.0
    %56 = vmatprep.subr.mxu0 0.0
    %57 = vmatpush1.msra.mxu0 0.0
    %58 = vmatprep.subr.mxu0 0.0
    %59 = vmatpush1.msra.mxu0 0.0
    %60 = vmatprep.subr.mxu0 0.0
    %61 = vmatpush1.msra.mxu0 0.0
    %62 = vmatprep.subr.mxu0 0.0
    %63 = vmatpush1.msra.mxu0 0.0
    %64 = vmatprep.subr.mxu0 0.0
    %65 = vmatpush1.msra.mxu0 0.0
    %66 = vmatprep.subr.mxu0 0.0
    %67 = vmatpush1.msra.mxu0 0.0
    %68 = vmatprep.subr.mxu0 0.0
    %69 = vmatpush1.msra.mxu0 0.0
    %70 = vmatprep.subr.mxu0 0.0
    %71 = vmatpush1.msra.mxu0 0.0
    %72 = vmatprep.subr.mxu0 0.0
    %73 = vmatpush1.msra.mxu0 0.0
    %74 = vmatprep.subr.mxu0 0.0
    %75 = vmatpush1.msra.mxu0 0.0
    %76 = vmatprep.subr.mxu0 0.0
    %77 = vmatpush1.msra.mxu0 0.0
    %78 = vmatprep.subr.mxu0 0.0
    %79 = vmatpush1.msra.mxu0 0.0
    %80 = vmatprep.subr.mxu0 0.0
    %81 = vmatpush1.msra.mxu0 0.0
    %82 = vmatprep.subr.mxu0 0.0
    %83 = vmatpush1.msra.mxu0 0.0
    %84 = vmatprep.subr.mxu0 0.0
    %85 = vmatpush1.msra.mxu0 0.0
    %86 = vmatprep.subr.mxu0 0.0
    %87 = vmatpush1.msra.mxu0 0.0
    %88 = vmatprep.subr.mxu0 0.0
    %89 = vmatpush1.msra.mxu0 0.0
    %90 = vmatprep.subr.mxu0 0.0
    %91 = vmatpush1.msra.mxu0 0.0
    %92 = vmatprep.subr.mxu0 0.0
    %93 = vmatpush1.msra.mxu0 0.0
    %94 = vmatprep.subr.mxu0 0.0
    %95 = vmatpush1.msra.mxu0 0.0
    %96 = vmatprep.subr.mxu0 0.0
    %97 = vmatpush1.msra.mxu0 0.0
    %98 = vmatprep.subr.mxu0 0.0
    %99 = vmatpush1.msra.mxu0 0.0
    %100 = vmatprep.mubr.f32.mxu0 0.0
    %101 = vmatmul.mubr.f32.gmra.mrb[0].mxu0 %v34
    %v102 = vpop.f32.mrb[0].mxu0
    %v103 = vadd.f32 %v30, %v102
    %v104 = vpop.f32.mrb[0].mxu0
    %105 = vdwg.mxu0
    %106 = vst [vmem:[#allocation2] sm:$0xff] %v103
    %v107 = vlaneseq
    %v108 = vand.u32 %v107, 127
    %vm109 = vcmp.lt.s32.totalorder %v108, 16
    %v110 = vsel %vm109, %v103, -1e+30
    %111 = vmax.xlane.f32.xlu0 %v110
    %v112 = vpop.xlane.xlu0 %111
    %v113 = vsub.f32 %v110, %v112
    %v114 = vmul.f32 %v113, 1.442695
    %v115 = vpow.pop %v114
    %116 = vadd.xlane.f32.xlu0 %v115
    %v117 = vpop.xlane.xlu0 %116
    %v118 = vlog2.pop %v117
    %v119 = vmul.f32 %v118, 0.6931472
    %v120 = vadd.f32 %v112, %v119
    %v121 = vld [vmem:[%s3] sm:$0xff]
    %vm122 = vcmp.ne.s32.totalorder %v121, 4294967196
    %v123 = vsel %vm122, 1, 0
    %v124 = vcvt.s32.f32 %v123
    %125 = vset.pattern.permute.xlu0 0
    %126 = vperm.xlu0 %125, %v121
    %v127 = vpop.permute.xlu0 %126
    %vm128 = vcmp.eq.s32.totalorder %v108, %v127
    %v129 = vsel %vm128, 1, 0
    %v130 = vcvt.s32.f32 %v129
    %v131 = vsub.f32 %v120, %v103
    %v132 = vmul.f32 %v130, %v131
    %134 = vset.pattern.permute.xlu0 0
    %135 = vperm.xlu0 %134, %v124
    %v136 = vpop.permute.xlu0 %135
    %v138 = vmul.f32 %v132, %v136
    %v139 = vrot.slane %v138, 4
    %v140 = vadd.f32 %v138, %v139
    %v141 = vrot.slane %v140, 2
    %v142 = vadd.f32 %v140, %v141
    %v143 = vrot.slane %v142, 1
    %v144 = vadd.f32 %v142, %v143
    %v145 = vlaneseq
    %v146 = vshrl.u32 %v145, 7
    %vm147 = vcmp.eq.s32.totalorder %v146, 0
    %v148 = vsel %vm147, %v144, 0.0
    %149 = vst [vmem:[%s5] sm:$0xff] %v148
    // Predicated region
    $region18: #{_forward_impl.1} parent=1 // pred_check
      _
    $region19: #{_forward_impl.1} parent=1 // pred_check_branch
      %151 = sbr.rel (0) target = $region21
    $region20: #{_forward_impl.1} parent=1 // pred_region
      %s153 = ssub.s32 128, 128
      %154 = vsyncadd [#allocation3], %s153
      %s156 = sshll.u32 [#allocation2], 4
      %s157 = int_to_ptr.vmem [resolvable:$true] %s156
      %159 = dma.vmem_to_hbm [thread:$0]  %s157, 128, %s4, [#allocation3]
    $region21: #{_forward_impl.1} parent=1 // pred_fallthru
      _
    // Predicated region
    $region22: #{_forward_impl.1} parent=1 // pred_check
      _
    $region23: #{_forward_impl.1} parent=1 // pred_check_branch
      %161 = sbr.rel (0) target = $region25
    $region24: #{_forward_impl.1} parent=1 // pred_region
      _
    $region25: #{_forward_impl.1} parent=1 // pred_fallthru
      _
    // Predicated region
    $region26: #{_forward_impl.1} parent=1 // pred_check
      _
    $region27: #{_forward_impl.1} parent=1 // pred_check_branch
      %163 = sbr.rel (0) target = $region29
    $region28: #{_forward_impl.1} parent=1 // pred_region
      %164 = dma.done [#allocation3], 128
    $region29: #{_forward_impl.1} parent=1 // pred_fallthru
      _
    // Predicated region
    $region30: #{_forward_impl.1} parent=1 // pred_check
      _
    $region31: #{_forward_impl.1} parent=1 // pred_check_branch
      %166 = sbr.rel (0) target = $region33
    $region32: #{_forward_impl.1} parent=1 // pred_region
      _
    $region33: #{_forward_impl.1} parent=1 // pred_fallthru
      _
    %167 = vsyncpa [#allocation3], 1

</llo_original>
